<compile_context>
chip_gen: v7x
topology: tpu7x:2x2x1
jax: 0.10.0
libtpu: 0.0.40
codegen_flags: <defaults>
</compile_context>

<pallas_src>
import jax
import jax.numpy as jnp
from jax.experimental import pallas as pl
from jax.experimental.pallas import tpu as pltpu


def _ffn_kernel(x_ref, w1_ref, b1_ref, w2_ref, b2_ref, o_ref):
    # x_ref: (tm, d_model), w1_ref: (d_model, d_ff), b1_ref: (1, d_ff)
    # w2_ref: (d_ff, d_model), b2_ref: (1, d_model), o_ref: (tm, d_model)
    x = x_ref[...]

    # linear_1: MXU matmul in native dtype, f32 accumulation.
    h = jnp.dot(x, w1_ref[...], preferred_element_type=jnp.float32)
    h = h + b1_ref[...].astype(jnp.float32)          # (1, d_ff) broadcast

    # ReLU in f32 (VPU).
    h = jnp.maximum(h, jnp.float32(0.0))

    # Cast hidden back to the compute dtype so the second matmul also runs on
    # the fast (e.g. bf16) MXU path, accumulating in f32.
    h = h.astype(x.dtype)

    # linear_2
    y = jnp.dot(h, w2_ref[...], preferred_element_type=jnp.float32)
    y = y + b2_ref[...].astype(jnp.float32)          # (1, d_model) broadcast

    # TODO(synk): nn.Dropout(p=0.0) is identity (and a no-op in eval mode);
    # stochastic dropout would need pltpu.prng_* and is intentionally omitted.
    o_ref[...] = y.astype(o_ref.dtype)


def _round_up(x, m):
    return (x + m - 1) // m * m


def _pick_row_tile(requested_tm, M, d_model, d_ff, itemsize,
                   vmem_budget_bytes=24 << 20):
    """Largest row tile (multiple of 8) whose working set fits the budget."""
    tm = min(requested_tm, _round_up(M, 8))
    tm = max(8, _round_up(tm, 8))
    # Resident weights + biases (single-buffered since index_map is constant).
    weight_bytes = (2 * d_model * d_ff + d_ff + d_model) * itemsize
    while tm > 8:
        # x tile + out tile are double-buffered by the pipeline; the f32
        # hidden activation (tm, d_ff) lives in registers/VMEM scratch.
        act_bytes = 2 * 2 * tm * d_model * itemsize + tm * d_ff * 4
        if weight_bytes + act_bytes <= vmem_budget_bytes:
            break
        tm //= 2
        tm = max(8, _round_up(tm, 8))
    return tm


def feed_forward(inputs, w1, b1, w2, b2, *, tm=512):
    """Feed-forward network forward pass via a fused Pallas TPU kernel.

    inputs: (B, S, d_model)
    w1: (d_model, d_ff), b1: (d_ff,)
    w2: (d_ff, d_model), b2: (d_model,)
    Returns: (B, S, d_model) in inputs.dtype.
    """
    B, S, d_model = inputs.shape
    d_ff = w1.shape[1]
    assert w1.shape == (d_model, d_ff)
    assert w2.shape == (d_ff, d_model)
    assert b1.shape == (d_ff,) and b2.shape == (d_model,)

    # Flatten the batch/sequence axes into one row axis and tile over it.
    M = B * S
    x2d = inputs.reshape(M, d_model)

    itemsize = jnp.dtype(inputs.dtype).itemsize
    tm = _pick_row_tile(tm, M, d_model, d_ff, itemsize)

    Mp = _round_up(M, tm)
    if Mp != M:
        x2d = jnp.pad(x2d, ((0, Mp - M), (0, 0)))

    # Biases as 2-D (1, N) rows for clean lane-major VMEM layout + broadcast.
    b1_2d = b1.reshape(1, d_ff)
    b2_2d = b2.reshape(1, d_model)

    grid = (Mp // tm,)

    grid_spec = pltpu.PrefetchScalarGridSpec(
        num_scalar_prefetch=0,
        grid=grid,
        in_specs=[
            pl.BlockSpec((tm, d_model), lambda i: (i, 0)),     # x row tile
            pl.BlockSpec((d_model, d_ff), lambda i: (0, 0)),   # w1 (resident)
            pl.BlockSpec((1, d_ff), lambda i: (0, 0)),         # b1
            pl.BlockSpec((d_ff, d_model), lambda i: (0, 0)),   # w2 (resident)
            pl.BlockSpec((1, d_model), lambda i: (0, 0)),      # b2
        ],
        out_specs=pl.BlockSpec((tm, d_model), lambda i: (i, 0)),
    )

    cost = pl.CostEstimate(
        flops=4 * Mp * d_model * d_ff,          # two matmuls, 2*M*K*N each
        transcendentals=0,
        bytes_accessed=(
            Mp * d_model * itemsize * 2         # x in + out
            + 2 * d_model * d_ff * itemsize     # weights
            + (d_ff + d_model) * itemsize       # biases
        ),
    )

    out2d = pl.pallas_call(
        _ffn_kernel,
        out_shape=jax.ShapeDtypeStruct((Mp, d_model), inputs.dtype),
        grid_spec=grid_spec,
        compiler_params=pltpu.CompilerParams(
            dimension_semantics=("parallel",),
            vmem_limit_bytes=64 << 20,
        ),
        cost_estimate=cost,
    )(x2d, w1, b1_2d, w2, b2_2d)

    if Mp != M:
        out2d = out2d[:M]
    return out2d.reshape(B, S, d_model)


def _reference(inputs, w1, b1, w2, b2):
    # Pure-JAX reference mirroring the PyTorch forward (dropout p=0).
    h = jnp.maximum(inputs @ w1 + b1, 0.0)
    return h @ w2 + b2


if __name__ == "__main__":
    key = jax.random.PRNGKey(0)
    B, S, d_model, d_ff = 2, 8, 128, 256   # lane-dense (multiples of 128)

    kx, kw1, kb1, kw2, kb2 = jax.random.split(key, 5)
    x = jax.random.normal(kx, (B, S, d_model), dtype=jnp.float32)
    # PyTorch nn.Linear-style uniform init, stored as (in, out) to avoid any
    # in-kernel transpose.
    lim1 = 1.0 / jnp.sqrt(jnp.float32(d_model))
    lim2 = 1.0 / jnp.sqrt(jnp.float32(d_ff))
    w1 = jax.random.uniform(kw1, (d_model, d_ff), jnp.float32, -lim1, lim1)
    b1 = jax.random.uniform(kb1, (d_ff,), jnp.float32, -lim1, lim1)
    w2 = jax.random.uniform(kw2, (d_ff, d_model), jnp.float32, -lim2, lim2)
    b2 = jax.random.uniform(kb2, (d_model,), jnp.float32, -lim2, lim2)

    out = feed_forward(x, w1, b1, w2, b2)
    out = jax.block_until_ready(out)

    ref = _reference(x, w1, b1, w2, b2)
    assert out.shape == (B, S, d_model), out.shape
    assert jnp.allclose(out, ref, atol=1e-4, rtol=1e-4), float(
        jnp.max(jnp.abs(out - ref)))

    print("KERNEL_OK")
</pallas_src>

<mosaic_0001>
module attributes {stable_mosaic.version = 11 : i64} {
  func.func @_ffn_kernel(%arg0: i32, %arg1: memref<16x128xf32, #tpu.memory_space<vmem>>, %arg2: memref<128x256xf32, #tpu.memory_space<vmem>>, %arg3: memref<1x256xf32, #tpu.memory_space<vmem>>, %arg4: memref<256x128xf32, #tpu.memory_space<vmem>>, %arg5: memref<1x128xf32, #tpu.memory_space<vmem>>, %arg6: memref<16x128xf32, #tpu.memory_space<vmem>>) attributes {dimension_semantics = [#tpu.dimension_semantics<parallel>], iteration_bounds = array<i64: 1>, scalar_prefetch = 0 : i64, scratch_operands = 0 : i64, tpu.core_type = #tpu.core_type<tc>, window_params = [{transform_indices = @transform_0, window_bounds = array<i64: 16, 128>}, {pipeline_mode = #tpu.pipeline_mode<synchronous>, transform_indices = @transform_1, window_bounds = array<i64: 128, 256>}, {pipeline_mode = #tpu.pipeline_mode<synchronous>, transform_indices = @transform_2, window_bounds = array<i64: 1, 256>}, {pipeline_mode = #tpu.pipeline_mode<synchronous>, transform_indices = @transform_3, window_bounds = array<i64: 256, 128>}, {pipeline_mode = #tpu.pipeline_mode<synchronous>, transform_indices = @transform_4, window_bounds = array<i64: 1, 128>}, {transform_indices = @transform_5, window_bounds = array<i64: 16, 128>}]} {
    %c0 = arith.constant 0 : index
    %c0_0 = arith.constant 0 : index
    %0 = vector.load %arg1[%c0, %c0_0] : memref<16x128xf32, #tpu.memory_space<vmem>>, vector<16x128xf32>
    %c0_1 = arith.constant 0 : index
    %c0_2 = arith.constant 0 : index
    %1 = vector.load %arg2[%c0_1, %c0_2] : memref<128x256xf32, #tpu.memory_space<vmem>>, vector<128x256xf32>
    %cst = arith.constant dense<0.000000e+00> : vector<16x256xf32>
    %2 = tpu.matmul %0, %1, %cst {dimension_numbers = #tpu.dot_dimension_numbers<[1], [0], [0], [1], [0, 0, 1, 1], [], []>} : vector<16x128xf32>, vector<128x256xf32>, vector<16x256xf32> -> vector<16x256xf32>
    %c0_3 = arith.constant 0 : index
    %c0_4 = arith.constant 0 : index
    %3 = vector.load %arg3[%c0_3, %c0_4] : memref<1x256xf32, #tpu.memory_space<vmem>>, vector<1x256xf32>
    %4 = vector.broadcast %3 : vector<1x256xf32> to vector<16x256xf32>
    %5 = arith.addf %2, %4 : vector<16x256xf32>
    %cst_5 = arith.constant 0.000000e+00 : f32
    %6 = vector.broadcast %cst_5 : f32 to vector<16x256xf32>
    %7 = arith.maximumf %5, %6 : vector<16x256xf32>
    %c0_6 = arith.constant 0 : index
    %c0_7 = arith.constant 0 : index
    %8 = vector.load %arg4[%c0_6, %c0_7] : memref<256x128xf32, #tpu.memory_space<vmem>>, vector<256x128xf32>
    %cst_8 = arith.constant dense<0.000000e+00> : vector<16x128xf32>
    %9 = tpu.matmul %7, %8, %cst_8 {dimension_numbers = #tpu.dot_dimension_numbers<[1], [0], [0], [1], [0, 0, 1, 1], [], []>} : vector<16x256xf32>, vector<256x128xf32>, vector<16x128xf32> -> vector<16x128xf32>
    %c0_9 = arith.constant 0 : index
    %c0_10 = arith.constant 0 : index
    %10 = vector.load %arg5[%c0_9, %c0_10] : memref<1x128xf32, #tpu.memory_space<vmem>>, vector<1x128xf32>
    %11 = vector.broadcast %10 : vector<1x128xf32> to vector<16x128xf32>
    %12 = arith.addf %9, %11 : vector<16x128xf32>
    %c0_11 = arith.constant 0 : index
    %c0_12 = arith.constant 0 : index
    %13 = vector.load %arg6[%c0_11, %c0_12] : memref<16x128xf32, #tpu.memory_space<vmem>>, vector<16x128xf32>
    tpu.vector_store %arg6[%c0_11, %c0_12], %12 {strides = array<i32>} : memref<16x128xf32, #tpu.memory_space<vmem>>, vector<16x128xf32>,
    return
  }
  func.func @transform_0(%arg0: i32) -> (i32, i32) {
    %c0_i32 = arith.constant 0 : i32
    %c0_i32_0 = arith.constant 0 : i32
    return %arg0, %c0_i32 : i32, i32
  }
  func.func @transform_1(%arg0: i32) -> (i32, i32) {
    %c0_i32 = arith.constant 0 : i32
    %c0_i32_0 = arith.constant 0 : i32
    %c0_i32_1 = arith.constant 0 : i32
    return %c0_i32, %c0_i32_0 : i32, i32
  }
  func.func @transform_2(%arg0: i32) -> (i32, i32) {
    %c0_i32 = arith.constant 0 : i32
    %c0_i32_0 = arith.constant 0 : i32
    %c0_i32_1 = arith.constant 0 : i32
    return %c0_i32, %c0_i32_0 : i32, i32
  }
  func.func @transform_3(%arg0: i32) -> (i32, i32) {
    %c0_i32 = arith.constant 0 : i32
    %c0_i32_0 = arith.constant 0 : i32
    %c0_i32_1 = arith.constant 0 : i32
    return %c0_i32, %c0_i32_0 : i32, i32
  }
  func.func @transform_4(%arg0: i32) -> (i32, i32) {
    %c0_i32 = arith.constant 0 : i32
    %c0_i32_0 = arith.constant 0 : i32
    %c0_i32_1 = arith.constant 0 : i32
    return %c0_i32, %c0_i32_0 : i32, i32
  }
  func.func @transform_5(%arg0: i32) -> (i32, i32) {
    %c0_i32 = arith.constant 0 : i32
    %c0_i32_0 = arith.constant 0 : i32
    return %arg0, %c0_i32 : i32, i32
  }
}

</mosaic_0001>

<llo_original>
// kernel: tpu_custom_call.1
$region0: #{tpu_custom_call.1}
  #allocation0 [shape = 'u32[]', space=smem, size = 0x4, offset = 0x4, fixed_abs, tag = 'smem constant byte address 0x4 - core index']
  #allocation1 [shape = 'u32[144,128]{1,0:T(1,128)}', space=vmem, size = 0x12000, scoped, tag = 'internal scratch']
  %s0 = inlined_call_operand.hbm [shape: f32[16,128], index: 0, kind: input, shape index: {}]
  %s1 = inlined_call_operand.hbm [shape: f32[128,256], index: 1, kind: input, shape index: {}]
  %s2 = inlined_call_operand.hbm [shape: f32[1,256], index: 2, kind: input, shape index: {}]
  %s3 = inlined_call_operand.hbm [shape: f32[256,128], index: 3, kind: input, shape index: {}]
  %s4 = inlined_call_operand.hbm [shape: f32[1,128], index: 4, kind: input, shape index: {}]
  %s5 = inlined_call_operand.hbm [shape: f32[16,128], index: 5, kind: output, shape index: {}]
  %s6 = sld [smem:[#allocation0]]
  $region50: #{tpu_custom_call.1} parent=0
    _
  %s8 = ssub.s32 1, %s6
  %s9 = scalar_select 0, %s8, %s6
  $region1: #{tpu_custom_call.1} parent=0
    #allocation2 [shape = 'u8[8192]{0}', space=vmem, size = 0x2000, scoped, tag = 'input window, operand 0, single buffered']
    #allocation3 [shape = 's32[1]{0}', space=sflag, size = 0x4, scoped, tag = 'scoped memory for tpu_custom_call.1']
    #allocation4 [shape = 's32[1]{0}', space=sflag, size = 0x4, scoped, tag = 'scoped memory for tpu_custom_call.1']
    #allocation5 [shape = 'u8[131072]{0}', space=vmem, size = 0x20000, scoped, tag = 'input window, operand 1, single buffered']
    #allocation6 [shape = 's32[1]{0}', space=sflag, size = 0x4, scoped, tag = 'scoped memory for tpu_custom_call.1']
    #allocation7 [shape = 'u8[1024]{0}', space=vmem, size = 0x400, scoped, tag = 'input window, operand 2, single buffered']
    #allocation8 [shape = 'u8[131072]{0}', space=vmem, size = 0x20000, scoped, tag = 'input window, operand 3, single buffered']
    #allocation9 [shape = 's32[1]{0}', space=sflag, size = 0x4, scoped, tag = 'scoped memory for tpu_custom_call.1']
    #allocation10 [shape = 'u8[512]{0}', space=vmem, size = 0x400, scoped, tag = 'input window, operand 4, single buffered']
    #allocation11 [shape = 'u8[8192]{0}', space=vmem, size = 0x2000, scoped, tag = 'output window, operand 0, single buffered']
    %10 = vsyncpa [#allocation3], 0
    %11 = vsyncpa [#allocation6], 0
    %12 = vsyncpa [#allocation9], 0
    %13 = vsyncpa [#allocation4], 0
    // Predicated region
    $region2: #{tpu_custom_call.1} parent=1 // pred_check
      _
    $region3: #{tpu_custom_call.1} parent=1 // pred_check_branch
      %15 = sbr.rel (0) target = $region5
    $region4: #{tpu_custom_call.1} parent=1 // pred_region
      %s17 = ssub.s32 256, 256
      %18 = vsyncadd [#allocation3], %s17
      %s19 = sshll.u32 [#allocation2], 4
      %s20 = int_to_ptr.vmem [resolvable:$true] %s19
      %25 = dma.hbm_to_vmem [thread:$0]  %s0, 256, %s20, [#allocation3], 128, 128, 8
    $region5: #{tpu_custom_call.1} parent=1 // pred_fallthru
      _
    // Predicated region
    $region6: #{tpu_custom_call.1} parent=1 // pred_check
      _
    $region7: #{tpu_custom_call.1} parent=1 // pred_check_branch
      %27 = sbr.rel (0) target = $region9
    $region8: #{tpu_custom_call.1} parent=1 // pred_region
      %s29 = ssub.s32 4096, 4096
      %30 = vsyncadd [#allocation6], %s29
      %s31 = sshll.u32 [#allocation5], 4
      %s32 = int_to_ptr.vmem [resolvable:$true] %s31
      %37 = dma.hbm_to_vmem [thread:$0]  %s1, 4096, %s32, [#allocation6], 256, 256, 16
    $region9: #{tpu_custom_call.1} parent=1 // pred_fallthru
      _
    // Predicated region
    $region10: #{tpu_custom_call.1} parent=1 // pred_check
      _
    $region11: #{tpu_custom_call.1} parent=1 // pred_check_branch
      %39 = sbr.rel (0) target = $region13
    $region12: #{tpu_custom_call.1} parent=1 // pred_region
      %s41 = ssub.s32 32, 32
      %42 = vsyncadd [#allocation6], %s41
      %s44 = sshll.u32 [#allocation7], 4
      %s45 = int_to_ptr.vmem [resolvable:$true] %s44
      %47 = dma.hbm_to_vmem [thread:$0]  %s2, 32, %s45, [#allocation6]
    $region13: #{tpu_custom_call.1} parent=1 // pred_fallthru
      _
    // Predicated region
    $region14: #{tpu_custom_call.1} parent=1 // pred_check
      _
    $region15: #{tpu_custom_call.1} parent=1 // pred_check_branch
      %49 = sbr.rel (0) target = $region17
    $region16: #{tpu_custom_call.1} parent=1 // pred_region
      %s51 = ssub.s32 4096, 4096
      %52 = vsyncadd [#allocation9], %s51
      %s53 = sshll.u32 [#allocation8], 4
      %s54 = int_to_ptr.vmem [resolvable:$true] %s53
      %59 = dma.hbm_to_vmem [thread:$0]  %s3, 4096, %s54, [#allocation9], 128, 128, 8
    $region17: #{tpu_custom_call.1} parent=1 // pred_fallthru
      _
    // Predicated region
    $region18: #{tpu_custom_call.1} parent=1 // pred_check
      _
    $region19: #{tpu_custom_call.1} parent=1 // pred_check_branch
      %61 = sbr.rel (0) target = $region21
    $region20: #{tpu_custom_call.1} parent=1 // pred_region
      %s63 = ssub.s32 16, 16
      %64 = vsyncadd [#allocation9], %s63
      %s66 = sshll.u32 [#allocation10], 4
      %s67 = int_to_ptr.vmem [resolvable:$true] %s66
      %69 = dma.hbm_to_vmem [thread:$0]  %s4, 16, %s67, [#allocation9]
    $region21: #{tpu_custom_call.1} parent=1 // pred_fallthru
      _
    // Predicated region
    $region22: #{tpu_custom_call.1} parent=1 // pred_check
      _
    $region23: #{tpu_custom_call.1} parent=1 // pred_check_branch
      %71 = sbr.rel (0) target = $region25
    $region24: #{tpu_custom_call.1} parent=1 // pred_region
      %72 = dma.done [#allocation3], 256
    $region25: #{tpu_custom_call.1} parent=1 // pred_fallthru
      _
    // Predicated region
    $region26: #{tpu_custom_call.1} parent=1 // pred_check
      _
    $region27: #{tpu_custom_call.1} parent=1 // pred_check_branch
      %74 = sbr.rel (0) target = $region29
    $region28: #{tpu_custom_call.1} parent=1 // pred_region
      %75 = dma.done [#allocation6], 4096
    $region29: #{tpu_custom_call.1} parent=1 // pred_fallthru
      _
    // Predicated region
    $region30: #{tpu_custom_call.1} parent=1 // pred_check
      _
    $region31: #{tpu_custom_call.1} parent=1 // pred_check_branch
      %77 = sbr.rel (0) target = $region33
    $region32: #{tpu_custom_call.1} parent=1 // pred_region
      %78 = dma.done [#allocation6], 32
    $region33: #{tpu_custom_call.1} parent=1 // pred_fallthru
      _
    // Predicated region
    $region34: #{tpu_custom_call.1} parent=1 // pred_check
      _
    $region35: #{tpu_custom_call.1} parent=1 // pred_check_branch
      %80 = sbr.rel (0) target = $region37
    $region36: #{tpu_custom_call.1} parent=1 // pred_region
      %81 = dma.done [#allocation9], 4096
    $region37: #{tpu_custom_call.1} parent=1 // pred_fallthru
      _
    // Predicated region
    $region38: #{tpu_custom_call.1} parent=1 // pred_check
      _
    $region39: #{tpu_custom_call.1} parent=1 // pred_check_branch
      %83 = sbr.rel (0) target = $region41
    $region40: #{tpu_custom_call.1} parent=1 // pred_region
      %84 = dma.done [#allocation9], 16
    $region41: #{tpu_custom_call.1} parent=1 // pred_fallthru
      _
    %v85 = vld [vmem:[#allocation2] sm:$0xff]
    %v86 = vld [vmem:[#allocation2 + $0x8] sm:$0xff]
    %v87 = vld [vmem:[#allocation5] sm:$0xff]
    %v88 = vld [vmem:[#allocation5 + $0x8] sm:$0xff]
    %v89 = vld [vmem:[#allocation5 + $0x10] sm:$0xff]
    %v90 = vld [vmem:[#allocation5 + $0x18] sm:$0xff]
    %v91 = vld [vmem:[#allocation5 + $0x20] sm:$0xff]
    %v92 = vld [vmem:[#allocation5 + $0x28] sm:$0xff]
    %v93 = vld [vmem:[#allocation5 + $0x30] sm:$0xff]
    %v94 = vld [vmem:[#allocation5 + $0x38] sm:$0xff]
    %v95 = vld [vmem:[#allocation5 + $0x40] sm:$0xff]
    %v96 = vld [vmem:[#allocation5 + $0x48] sm:$0xff]
    %v97 = vld [vmem:[#allocation5 + $0x50] sm:$0xff]
    %v98 = vld [vmem:[#allocation5 + $0x58] sm:$0xff]
    %v99 = vld [vmem:[#allocation5 + $0x60] sm:$0xff]
    %v100 = vld [vmem:[#allocation5 + $0x68] sm:$0xff]
    %v101 = vld [vmem:[#allocation5 + $0x70] sm:$0xff]
    %v102 = vld [vmem:[#allocation5 + $0x78] sm:$0xff]
    %v103 = vld [vmem:[#allocation5 + $0x80] sm:$0xff]
    %v104 = vld [vmem:[#allocation5 + $0x88] sm:$0xff]
    %v105 = vld [vmem:[#allocation5 + $0x90] sm:$0xff]
    %v106 = vld [vmem:[#allocation5 + $0x98] sm:$0xff]
    %v107 = vld [vmem:[#allocation5 + $0xa0] sm:$0xff]
    %v108 = vld [vmem:[#allocation5 + $0xa8] sm:$0xff]
    %v109 = vld [vmem:[#allocation5 + $0xb0] sm:$0xff]
    %v110 = vld [vmem:[#allocation5 + $0xb8] sm:$0xff]
    %v111 = vld [vmem:[#allocation5 + $0xc0] sm:$0xff]
    %v112 = vld [vmem:[#allocation5 + $0xc8] sm:$0xff]
    %v113 = vld [vmem:[#allocation5 + $0xd0] sm:$0xff]
    %v114 = vld [vmem:[#allocation5 + $0xd8] sm:$0xff]
    %v115 = vld [vmem:[#allocation5 + $0xe0] sm:$0xff]
    %v116 = vld [vmem:[#allocation5 + $0xe8] sm:$0xff]
    %v117 = vld [vmem:[#allocation5 + $0xf0] sm:$0xff]
    %v118 = vld [vmem:[#allocation5 + $0xf8] sm:$0xff]
    %v119 = vld [vmem:[#allocation7] sm:$0x3]
    %v121 = vlaneseq
    %v122 = vshrl.u32 %v121, 7
    %v123 = vsub.s32 0, %v122
    %v124 = vrot.slane %v119, %v123
    %v125 = vlaneseq
    %v126 = vshrl.u32 %v125, 7
    %v127 = vsub.s32 1, %v126
    %v128 = vrot.slane %v119, %v127
    %131 = vmatprep.subr.mxu0 %v88
    %132 = vmatpush1.msra.mxu0 %v87
    %133 = vmatprep.subr.mxu0 %v90
    %134 = vmatpush1.msra.mxu0 %v89
    %135 = vmatprep.subr.mxu0 %v92
    %136 = vmatpush1.msra.mxu0 %v91
    %137 = vmatprep.subr.mxu0 %v94
    %138 = vmatpush1.msra.mxu0 %v93
    %139 = vmatprep.subr.mxu0 %v96
    %140 = vmatpush1.msra.mxu0 %v95
    %141 = vmatprep.subr.mxu0 %v98
    %142 = vmatpush1.msra.mxu0 %v97
    %143 = vmatprep.subr.mxu0 %v100
    %144 = vmatpush1.msra.mxu0 %v99
    %145 = vmatprep.subr.mxu0 %v102
    %146 = vmatpush1.msra.mxu0 %v101
    %147 = vmatprep.subr.mxu0 %v104
    %148 = vmatpush1.msra.mxu0 %v103
    %149 = vmatprep.subr.mxu0 %v106
    %150 = vmatpush1.msra.mxu0 %v105
    %151 = vmatprep.subr.mxu0 %v108
    %152 = vmatpush1.msra.mxu0 %v107
    %153 = vmatprep.subr.mxu0 %v110
    %154 = vmatpush1.msra.mxu0 %v109
    %155 = vmatprep.subr.mxu0 %v112
    %156 = vmatpush1.msra.mxu0 %v111
    %157 = vmatprep.subr.mxu0 %v114
    %158 = vmatpush1.msra.mxu0 %v113
    %159 = vmatprep.subr.mxu0 %v116
    %160 = vmatpush1.msra.mxu0 %v115
    %161 = vmatprep.subr.mxu0 %v118
    %162 = vmatpush1.msra.mxu0 %v117
    %163 = vmatprep.subr.mxu0 0.0
    %164 = vmatpush1.msra.mxu0 0.0
    %165 = vmatprep.subr.mxu0 0.0
    %166 = vmatpush1.msra.mxu0 0.0
    %167 = vmatprep.subr.mxu0 0.0
    %168 = vmatpush1.msra.mxu0 0.0
    %169 = vmatprep.subr.mxu0 0.0
    %170 = vmatpush1.msra.mxu0 0.0
    %171 = vmatprep.subr.mxu0 0.0
    %172 = vmatpush1.msra.mxu0 0.0
    %173 = vmatprep.subr.mxu0 0.0
    %174 = vmatpush1.msra.mxu0 0.0
    %175 = vmatprep.subr.mxu0 0.0
    %176 = vmatpush1.msra.mxu0 0.0
    %177 = vmatprep.subr.mxu0 0.0
    %178 = vmatpush1.msra.mxu0 0.0
    %179 = vmatprep.subr.mxu0 0.0
    %180 = vmatpush1.msra.mxu0 0.0
    %181 = vmatprep.subr.mxu0 0.0
    %182 = vmatpush1.msra.mxu0 0.0
    %183 = vmatprep.subr.mxu0 0.0
    %184 = vmatpush1.msra.mxu0 0.0
    %185 = vmatprep.subr.mxu0 0.0
    %186 = vmatpush1.msra.mxu0 0.0
    %187 = vmatprep.subr.mxu0 0.0
    %188 = vmatpush1.msra.mxu0 0.0
    %189 = vmatprep.subr.mxu0 0.0
    %190 = vmatpush1.msra.mxu0 0.0
    %191 = vmatprep.subr.mxu0 0.0
    %192 = vmatpush1.msra.mxu0 0.0
    %193 = vmatprep.subr.mxu0 0.0
    %194 = vmatpush1.msra.mxu0 0.0
    %195 = vmatprep.mubr.f32.mxu0 0.0
    %196 = vmatmul.mubr.f32.gmra.mrb[0].mxu0 %v85
    %v197 = vpop.f32.mrb[0].mxu0
    %v198 = vadd.f32 %v124, %v197
    %v199 = vpop.f32.mrb[0].mxu0
    %v200 = vadd.f32 %v128, %v199
    %201 = vmatprep.mubr.f32.mxu0 0.0
    %202 = vmatmul.mubr.f32.gmra.mrb[0].mxu0 %v86
    %v203 = vpop.f32.mrb[0].mxu0
    %v204 = vadd.f32 %v124, %v203
    %v205 = vpop.f32.mrb[0].mxu0
    %v206 = vadd.f32 %v128, %v205
    %207 = vdwg.mxu0
    %v208 = vmax.f32 %v198, 0.0
    %v209 = vmax.f32 %v200, 0.0
    %v210 = vmax.f32 %v204, 0.0
    %v211 = vmax.f32 %v206, 0.0
    %v212 = vld [vmem:[#allocation8] sm:$0xff]
    %v213 = vld [vmem:[#allocation8 + $0x8] sm:$0xff]
    %v214 = vld [vmem:[#allocation8 + $0x10] sm:$0xff]
    %v215 = vld [vmem:[#allocation8 + $0x18] sm:$0xff]
    %v216 = vld [vmem:[#allocation8 + $0x20] sm:$0xff]
    %v217 = vld [vmem:[#allocation8 + $0x28] sm:$0xff]
    %v218 = vld [vmem:[#allocation8 + $0x30] sm:$0xff]
    %v219 = vld [vmem:[#allocation8 + $0x38] sm:$0xff]
    %v220 = vld [vmem:[#allocation8 + $0x40] sm:$0xff]
    %v221 = vld [vmem:[#allocation8 + $0x48] sm:$0xff]
    %v222 = vld [vmem:[#allocation8 + $0x50] sm:$0xff]
    %v223 = vld [vmem:[#allocation8 + $0x58] sm:$0xff]
    %v224 = vld [vmem:[#allocation8 + $0x60] sm:$0xff]
    %v225 = vld [vmem:[#allocation8 + $0x68] sm:$0xff]
    %v226 = vld [vmem:[#allocation8 + $0x70] sm:$0xff]
    %v227 = vld [vmem:[#allocation8 + $0x78] sm:$0xff]
    %v228 = vld [vmem:[#allocation8 + $0x80] sm:$0xff]
    %v229 = vld [vmem:[#allocation8 + $0x88] sm:$0xff]
    %v230 = vld [vmem:[#allocation8 + $0x90] sm:$0xff]
    %v231 = vld [vmem:[#allocation8 + $0x98] sm:$0xff]
    %v232 = vld [vmem:[#allocation8 + $0xa0] sm:$0xff]
    %v233 = vld [vmem:[#allocation8 + $0xa8] sm:$0xff]
    %v234 = vld [vmem:[#allocation8 + $0xb0] sm:$0xff]
    %v235 = vld [vmem:[#allocation8 + $0xb8] sm:$0xff]
    %v236 = vld [vmem:[#allocation8 + $0xc0] sm:$0xff]
    %v237 = vld [vmem:[#allocation8 + $0xc8] sm:$0xff]
    %v238 = vld [vmem:[#allocation8 + $0xd0] sm:$0xff]
    %v239 = vld [vmem:[#allocation8 + $0xd8] sm:$0xff]
    %v240 = vld [vmem:[#allocation8 + $0xe0] sm:$0xff]
    %v241 = vld [vmem:[#allocation8 + $0xe8] sm:$0xff]
    %v242 = vld [vmem:[#allocation8 + $0xf0] sm:$0xff]
    %v243 = vld [vmem:[#allocation8 + $0xf8] sm:$0xff]
    %v244 = vld [vmem:[#allocation10] sm:$0x1]
    %v246 = vlaneseq
    %v247 = vshrl.u32 %v246, 7
    %v248 = vsub.s32 0, %v247
    %v249 = vrot.slane %v244, %v248
    %251 = vmatprep.subr.mxu0 0.0
    %252 = vmatpush1.msra.mxu0 %v212
    %253 = vmatprep.subr.mxu0 0.0
    %254 = vmatpush1.msra.mxu0 %v213
    %255 = vmatprep.subr.mxu0 0.0
    %256 = vmatpush1.msra.mxu0 %v214
    %257 = vmatprep.subr.mxu0 0.0
    %258 = vmatpush1.msra.mxu0 %v215
    %259 = vmatprep.subr.mxu0 0.0
    %260 = vmatpush1.msra.mxu0 %v216
    %261 = vmatprep.subr.mxu0 0.0
    %262 = vmatpush1.msra.mxu0 %v217
    %263 = vmatprep.subr.mxu0 0.0
    %264 = vmatpush1.msra.mxu0 %v218
    %265 = vmatprep.subr.mxu0 0.0
    %266 = vmatpush1.msra.mxu0 %v219
    %267 = vmatprep.subr.mxu0 0.0
    %268 = vmatpush1.msra.mxu0 %v220
    %269 = vmatprep.subr.mxu0 0.0
    %270 = vmatpush1.msra.mxu0 %v221
    %271 = vmatprep.subr.mxu0 0.0
    %272 = vmatpush1.msra.mxu0 %v222
    %273 = vmatprep.subr.mxu0 0.0
    %274 = vmatpush1.msra.mxu0 %v223
    %275 = vmatprep.subr.mxu0 0.0
    %276 = vmatpush1.msra.mxu0 %v224
    %277 = vmatprep.subr.mxu0 0.0
    %278 = vmatpush1.msra.mxu0 %v225
    %279 = vmatprep.subr.mxu0 0.0
    %280 = vmatpush1.msra.mxu0 %v226
    %281 = vmatprep.subr.mxu0 0.0
    %282 = vmatpush1.msra.mxu0 %v227
    %283 = vmatprep.subr.mxu0 0.0
    %284 = vmatpush1.msra.mxu0 %v228
    %285 = vmatprep.subr.mxu0 0.0
    %286 = vmatpush1.msra.mxu0 %v229
    %287 = vmatprep.subr.mxu0 0.0
    %288 = vmatpush1.msra.mxu0 %v230
    %289 = vmatprep.subr.mxu0 0.0
    %290 = vmatpush1.msra.mxu0 %v231
    %291 = vmatprep.subr.mxu0 0.0
    %292 = vmatpush1.msra.mxu0 %v232
    %293 = vmatprep.subr.mxu0 0.0
    %294 = vmatpush1.msra.mxu0 %v233
    %295 = vmatprep.subr.mxu0 0.0
    %296 = vmatpush1.msra.mxu0 %v234
    %297 = vmatprep.subr.mxu0 0.0
    %298 = vmatpush1.msra.mxu0 %v235
    %299 = vmatprep.subr.mxu0 0.0
    %300 = vmatpush1.msra.mxu0 %v236
    %301 = vmatprep.subr.mxu0 0.0
    %302 = vmatpush1.msra.mxu0 %v237
    %303 = vmatprep.subr.mxu0 0.0
    %304 = vmatpush1.msra.mxu0 %v238
    %305 = vmatprep.subr.mxu0 0.0
    %306 = vmatpush1.msra.mxu0 %v239
    %307 = vmatprep.subr.mxu0 0.0
    %308 = vmatpush1.msra.mxu0 %v240
    %309 = vmatprep.subr.mxu0 0.0
    %310 = vmatpush1.msra.mxu0 %v241
    %311 = vmatprep.subr.mxu0 0.0
    %312 = vmatpush1.msra.mxu0 %v242
    %313 = vmatprep.subr.mxu0 0.0
    %314 = vmatpush1.msra.mxu0 %v243
    %315 = vmatprep.mubr.f32.mxu0 %v209
    %316 = vmatmul.mubr.f32.gmra.mrb[0].mxu0 %v208
    %v317 = vpop.f32.mrb[0].mxu0
    %v318 = vadd.f32 %v249, %v317
    %v319 = vpop.f32.mrb[0].mxu0
    %320 = vmatprep.mubr.f32.mxu0 %v211
    %321 = vmatmul.mubr.f32.gmra.mrb[0].mxu0 %v210
    %v322 = vpop.f32.mrb[0].mxu0
    %v323 = vadd.f32 %v249, %v322
    %v324 = vpop.f32.mrb[0].mxu0
    %325 = vdwg.mxu0
    %326 = vst [vmem:[#allocation11] sm:$0xff] %v318
    %327 = vst [vmem:[#allocation11 + $0x8] sm:$0xff] %v323
    // Predicated region
    $region42: #{tpu_custom_call.1} parent=1 // pred_check
      _
    $region43: #{tpu_custom_call.1} parent=1 // pred_check_branch
      %329 = sbr.rel (0) target = $region45
    $region44: #{tpu_custom_call.1} parent=1 // pred_region
      %s331 = ssub.s32 256, 256
      %332 = vsyncadd [#allocation4], %s331
      %s333 = sshll.u32 [#allocation11], 4
      %s334 = int_to_ptr.vmem [resolvable:$true] %s333
      %339 = dma.vmem_to_hbm [thread:$0]  %s334, 256, %s5, [#allocation4], 128, 128, 8
    $region45: #{tpu_custom_call.1} parent=1 // pred_fallthru
      _
    // Predicated region
    $region46: #{tpu_custom_call.1} parent=1 // pred_check
      _
    $region47: #{tpu_custom_call.1} parent=1 // pred_check_branch
      %341 = sbr.rel (0) target = $region49
    $region48: #{tpu_custom_call.1} parent=1 // pred_region
      %342 = dma.done [#allocation4], 256
    $region49: #{tpu_custom_call.1} parent=1 // pred_fallthru
      _
    %343 = vsyncpa [#allocation3], 1
    %344 = vsyncpa [#allocation6], 1
    %345 = vsyncpa [#allocation9], 1
    %346 = vsyncpa [#allocation4], 1

</llo_original>
